<compile_context>
chip_gen: v7x
topology: tpu7x:2x2x1
jax: 0.10.0
libtpu: 0.0.40
codegen_flags: <defaults>
</compile_context>

<pallas_src>
import functools

import jax
import jax.numpy as jnp
from jax.experimental import pallas as pl
from jax.experimental.pallas import tpu as pltpu


_LANE = 128
_NEG = -1e30   # "suppressed / padded" marker; sigmoid(_NEG) == 0.0


# ----------------------------------------------------------------------------
# Kernel 1: heatmap NMS on logits (kernel > 1 only).
# Block layout is lane-dense (c_tile, H*W).  Separable max pool:
# horizontal pass (lane rolls by +-dx), then vertical pass (lane rolls by
# +-dy*W), with one-sided boundary masks built from a (1, H*W) iota.
# Output: where(local_max, logit, -1e30).
# ----------------------------------------------------------------------------
def _nms_suppress_kernel(tl_ref, br_ref, tl_out, br_out, *, kernel, height, width):
    pad = (kernel - 1) // 2
    neg = jnp.float32(_NEG)
    n = tl_ref.shape[-1]                      # H * W (full spatial extent)
    idx = jax.lax.broadcasted_iota(jnp.int32, (1, n), 1)
    col = idx % width
    row = idx // width

    def suppress(x):
        # horizontal pass: neighbours at +-dx along the flattened lane axis
        hx = x
        for dx in range(1, pad + 1):
            r = pltpu.roll(x, shift=(n - dx) % n, axis=1)      # x[i + dx]
            hx = jnp.maximum(hx, jnp.where(col < width - dx, r, neg))
            l = pltpu.roll(x, shift=dx, axis=1)                # x[i - dx]
            hx = jnp.maximum(hx, jnp.where(col >= dx, l, neg))
        # vertical pass: neighbours at +-dy rows == +-dy*W flat elements
        hmax = hx
        for dy in range(1, pad + 1):
            s = dy * width
            d = pltpu.roll(hx, shift=(n - s) % n, axis=1)      # hx[i + dy*W]
            hmax = jnp.maximum(hmax, jnp.where(row < height - dy, d, neg))
            u = pltpu.roll(hx, shift=s, axis=1)                # hx[i - dy*W]
            hmax = jnp.maximum(hmax, jnp.where(row >= dy, u, neg))
        return jnp.where(hmax == x, x, neg)

    tl_out[...] = suppress(tl_ref[...])
    br_out[...] = suppress(br_ref[...])


def nms_suppress_logits(tl_heat, br_heat, kernel):
    B, C, H, W = tl_heat.shape
    N = H * W
    tl_flat = tl_heat.reshape(B, C, N)
    br_flat = br_heat.reshape(B, C, N)

    # footprint-derived channel tile: ~1 MiB per array per block
    # (4 arrays x 2 pipeline buffers = 8 MiB resident + temporaries, well
    #  under the 32 MiB scoped limit and v7x's 64 MiB physical VMEM).
    c_tile = int(max(1, min(C, (1024 * 1024) // (4 * N))))

    spec = pl.BlockSpec((None, c_tile, N), lambda b, c: (b, c, 0))
    out_t, out_b = pl.pallas_call(
        functools.partial(_nms_suppress_kernel, kernel=kernel, height=H, width=W),
        grid=(B, pl.cdiv(C, c_tile)),
        in_specs=[spec, spec],
        out_specs=(spec, spec),
        out_shape=(jax.ShapeDtypeStruct((B, C, N), tl_heat.dtype),
                   jax.ShapeDtypeStruct((B, C, N), br_heat.dtype)),
        compiler_params=pltpu.CompilerParams(
            dimension_semantics=("parallel", "parallel"),
            vmem_limit_bytes=32 * 1024 * 1024),
    )(tl_flat, br_flat)
    return out_t.reshape(B, C, H, W), out_b.reshape(B, C, H, W)


# ----------------------------------------------------------------------------
# Kernel 2: K_pad x K_pad pairwise corner score decode.
# Inputs are packed: tl as (b, K_pad, 7) columns, br as (b, 7, K_pad) rows.
# K is padded up to a multiple of 128 for lane-dense stores; padded rows/cols
# get -1e30 (strictly below the reference's -1), so the following top_k over
# num_dets <= K*K never selects them and semantics are preserved.
# ----------------------------------------------------------------------------
def _decode_scores_kernel(tl_ref, br_ref, scores_ref, *, ae_threshold, valid_k):
    tl = tl_ref[...]                      # (b, K_pad, 7)
    br = br_ref[...]                      # (b, 7, K_pad)
    # columns / rows = [score, y, x, tag, regr_x, regr_y, cls(float)]
    tl_s, tl_y, tl_x = tl[:, :, 0:1], tl[:, :, 1:2], tl[:, :, 2:3]
    tl_tag, tl_rx, tl_ry, tl_cls = (tl[:, :, 3:4], tl[:, :, 4:5],
                                    tl[:, :, 5:6], tl[:, :, 6:7])
    br_s, br_y, br_x = br[:, 0:1, :], br[:, 1:2, :], br[:, 2:3, :]
    br_tag, br_rx, br_ry, br_cls = (br[:, 3:4, :], br[:, 4:5, :],
                                    br[:, 5:6, :], br[:, 6:7, :])

    # regression-corrected corner coordinates
    tlx = tl_x + tl_rx                    # (b, K_pad, 1)
    tly = tl_y + tl_ry
    brx = br_x + br_rx                    # (b, 1, K_pad)
    bry = br_y + br_ry

    scores = (tl_s + br_s) * jnp.float32(0.5)            # (b, K_pad, K_pad)
    dists = jnp.abs(tl_tag - br_tag)
    invalid = ((tl_cls != br_cls)
               | (dists > jnp.float32(ae_threshold))
               | (brx < tlx)
               | (bry < tly))
    scores = jnp.where(invalid, jnp.float32(-1.0), scores)

    kp = scores_ref.shape[-1]
    row_i = jax.lax.broadcasted_iota(jnp.int32, (1, kp, 1), 1)
    col_i = jax.lax.broadcasted_iota(jnp.int32, (1, 1, kp), 2)
    pad_mask = (row_i >= valid_k) | (col_i >= valid_k)
    scores_ref[...] = jnp.where(pad_mask, jnp.float32(_NEG), scores)


def decode_pair_scores(tl_pack, br_pack, ae_threshold, valid_k):
    B, K_pad, nf = tl_pack.shape
    # <=2 grid steps: one per TensorCore on v7x; avoids per-image serial-loop
    # overhead on single-TC v5e/v6e.
    nsteps = min(B, 2)
    b_block = -(-B // nsteps)
    return pl.pallas_call(
        functools.partial(_decode_scores_kernel,
                          ae_threshold=ae_threshold, valid_k=valid_k),
        grid=(pl.cdiv(B, b_block),),
        in_specs=[pl.BlockSpec((b_block, K_pad, nf), lambda b: (b, 0, 0)),
                  pl.BlockSpec((b_block, nf, K_pad), lambda b: (b, 0, 0))],
        out_specs=pl.BlockSpec((b_block, K_pad, K_pad), lambda b: (b, 0, 0)),
        out_shape=jax.ShapeDtypeStruct((B, K_pad, K_pad), jnp.float32),
        compiler_params=pltpu.CompilerParams(
            dimension_semantics=("parallel",)),
    )(tl_pack, br_pack)


# ----------------------------------------------------------------------------
# JAX glue reproducing _gather_feat / _tranpose_and_gather_feat / topk
# ----------------------------------------------------------------------------
def _transpose_and_gather_feat(feat, ind):
    # feat: (B, Cf, H, W), ind: (B, K) flat index into H*W.  Gather on the
    # flattened spatial axis directly (no NHWC copy of the full map); only the
    # tiny (B, Cf, K) result is transposed.
    B, Cf, H, W = feat.shape
    f = feat.reshape(B, Cf, H * W)
    idx = jnp.broadcast_to(ind[:, None, :], (B, Cf, ind.shape[1]))
    g = jnp.take_along_axis(f, idx, axis=2)            # (B, Cf, K)
    return jnp.transpose(g, (0, 2, 1))                 # (B, K, Cf)


def _topk(scores, K):
    # scores: (B, C, H, W) (logits) -> same index outputs as CornerNet _topk;
    # the returned scores are LOGITS (caller applies sigmoid to the K values).
    B, C, H, W = scores.shape
    topk_scores, topk_inds_full = jax.lax.top_k(scores.reshape(B, -1), K)
    topk_clses = (topk_inds_full // (H * W)).astype(jnp.int32)
    topk_inds = (topk_inds_full % (H * W)).astype(jnp.int32)
    topk_ys = (topk_inds // W).astype(jnp.float32)
    topk_xs = (topk_inds % W).astype(jnp.float32)
    return topk_scores, topk_inds, topk_clses, topk_ys, topk_xs


# ----------------------------------------------------------------------------
# CornerNetPostProcessor (Pallas/JAX)
# ----------------------------------------------------------------------------
class CornerNetPostProcessorPallas:
    def __init__(self, nms_thresh, fpn_post_nms_top_n, strides,
                 K=(60, 30, 15, 8, 4), kernel=1, ae_threshold=1,
                 num_dets=(1000, 500, 200, 50, 10), min_size=0):
        self.K = K
        self.kernel = kernel
        self.ae_threshold = float(ae_threshold)
        self.num_dets = num_dets
        self.min_size = min_size
        self.nms_thresh = nms_thresh
        self.fpn_post_nms_top_n = fpn_post_nms_top_n
        self.strides = strides

    def forward_for_single_feature_map(self, out, image_sizes, K, num_dets, stride):
        tl_heat, br_heat, tl_tag, br_tag, tl_regr, br_regr = out
        B = tl_heat.shape[0]

        # --- heatmap stage.  Sigmoid is strictly monotone, so top_k can run
        #     on raw logits (kernel==1) or on NMS-masked logits (kernel>1,
        #     Pallas); sigmoid is applied only to the K selected scores.
        if self.kernel == 1:
            tl_masked, br_masked = tl_heat, br_heat       # 1x1 maxpool == identity
        else:
            tl_masked, br_masked = nms_suppress_logits(tl_heat, br_heat, self.kernel)

        tl_logit, tl_inds, tl_clses, tl_ys, tl_xs = _topk(tl_masked, K)
        br_logit, br_inds, br_clses, br_ys, br_xs = _topk(br_masked, K)
        tl_scores = jax.nn.sigmoid(tl_logit)              # suppressed -> 0.0
        br_scores = jax.nn.sigmoid(br_logit)

        # --- gather regressions / tags at corner locations (glue)
        tl_regr_g = _transpose_and_gather_feat(tl_regr, tl_inds)        # (B,K,2)
        br_regr_g = _transpose_and_gather_feat(br_regr, br_inds)        # (B,K,2)
        tl_tag_g = _transpose_and_gather_feat(tl_tag, tl_inds)[..., 0]  # (B,K)
        br_tag_g = _transpose_and_gather_feat(br_tag, br_inds)[..., 0]  # (B,K)

        # --- Pallas hot path: K_pad x K_pad pairwise score decode.
        K_pad = max(_LANE, ((K + _LANE - 1) // _LANE) * _LANE)
        tl_pack = jnp.stack(
            [tl_scores, tl_ys, tl_xs, tl_tag_g,
             tl_regr_g[..., 0], tl_regr_g[..., 1],
             tl_clses.astype(jnp.float32)], axis=-1)                    # (B,K,7)
        br_pack = jnp.stack(
            [br_scores, br_ys, br_xs, br_tag_g,
             br_regr_g[..., 0], br_regr_g[..., 1],
             br_clses.astype(jnp.float32)], axis=1)                     # (B,7,K)
        tl_pack = jnp.pad(tl_pack, ((0, 0), (0, K_pad - K), (0, 0)))
        br_pack = jnp.pad(br_pack, ((0, 0), (0, 0), (0, K_pad - K)))
        scores = decode_pair_scores(tl_pack, br_pack, self.ae_threshold, K)

        # --- final per-level top-k over corner pairs, then rebuild boxes from
        #     (tl_idx, br_idx) instead of gathering broadcast (B,K,K) tensors.
        top_scores, inds = jax.lax.top_k(scores.reshape(B, K_pad * K_pad), num_dets)
        tl_idx = inds // K_pad
        br_idx = inds % K_pad

        tlx = tl_xs + tl_regr_g[..., 0]
        tly = tl_ys + tl_regr_g[..., 1]
        brx = br_xs + br_regr_g[..., 0]
        bry = br_ys + br_regr_g[..., 1]
        x1 = jnp.take_along_axis(tlx, tl_idx, axis=1) * jnp.float32(stride)
        y1 = jnp.take_along_axis(tly, tl_idx, axis=1) * jnp.float32(stride)
        x2 = jnp.take_along_axis(brx, br_idx, axis=1) * jnp.float32(stride)
        y2 = jnp.take_along_axis(bry, br_idx, axis=1) * jnp.float32(stride)

        clses = jnp.take_along_axis(tl_clses, tl_idx, axis=1) + 1
        tl_scores_out = jnp.take_along_axis(tl_scores, tl_idx, axis=1)
        br_scores_out = jnp.take_along_axis(br_scores, br_idx, axis=1)

        # BoxList.clip_to_image(remove_empty=False), TO_REMOVE = 1.
        # NOTE: the reference clips every image with image_sizes[0]; kept as-is.
        h, w = image_sizes[0]
        x1 = jnp.clip(x1, 0.0, w - 1.0)
        y1 = jnp.clip(y1, 0.0, h - 1.0)
        x2 = jnp.clip(x2, 0.0, w - 1.0)
        y2 = jnp.clip(y2, 0.0, h - 1.0)
        bboxes = jnp.stack([x1, y1, x2, y2], axis=-1)
        # remove_small_boxes with min_size=0 keeps every box after clipping.

        return bboxes, top_scores, clses, tl_scores_out, br_scores_out

    def forward(self, outs, image_sizes):
        per_level = []
        for level, out in enumerate(outs):
            per_level.append(self.forward_for_single_feature_map(
                out, image_sizes, self.K[level], self.num_dets[level],
                self.strides[level]))

        # cat_boxlist: concatenate detections of all levels per image
        bboxes = jnp.concatenate([p[0] for p in per_level], axis=1)
        scores = jnp.concatenate([p[1] for p in per_level], axis=1)
        labels = jnp.concatenate([p[2] for p in per_level], axis=1)
        tl_sc = jnp.concatenate([p[3] for p in per_level], axis=1)
        br_sc = jnp.concatenate([p[4] for p in per_level], axis=1)

        # TODO(synk): select_over_all_levels / boxlist_ml_nms (class-aware IoU NMS,
        # kthvalue thresholding, variable-length outputs) not implemented.
        B = bboxes.shape[0]
        results = []
        for b in range(B):
            results.append({
                "bbox": bboxes[b],
                "labels": labels[b],
                "scores": scores[b],
                "tl_scores": tl_sc[b],
                "br_scores": br_sc[b],
            })
        return results


# ----------------------------------------------------------------------------
if __name__ == "__main__":
    key = jax.random.PRNGKey(0)
    B, C = 2, 4
    level_cfgs = [
        dict(H=16, W=16, K=8, num_dets=16, stride=4),
        dict(H=8, W=8, K=4, num_dets=8, stride=8),
    ]

    outs = []
    for cfg in level_cfgs:
        key, *ks = jax.random.split(key, 7)
        H, W = cfg["H"], cfg["W"]
        tl_heat = jax.random.normal(ks[0], (B, C, H, W), jnp.float32)
        br_heat = jax.random.normal(ks[1], (B, C, H, W), jnp.float32)
        tl_tag = jax.random.normal(ks[2], (B, 1, H, W), jnp.float32)
        br_tag = jax.random.normal(ks[3], (B, 1, H, W), jnp.float32)
        tl_regr = jax.random.normal(ks[4], (B, 2, H, W), jnp.float32)
        br_regr = jax.random.normal(ks[5], (B, 2, H, W), jnp.float32)
        outs.append((tl_heat, br_heat, tl_tag, br_tag, tl_regr, br_regr))

    image_sizes = [(64, 64), (64, 64)]  # (h, w) per image

    # kernel == 1 (module default): decode Pallas kernel only, no heatmap pass.
    post = CornerNetPostProcessorPallas(
        nms_thresh=0.5,
        fpn_post_nms_top_n=20,
        strides=[cfg["stride"] for cfg in level_cfgs],
        K=[cfg["K"] for cfg in level_cfgs],
        kernel=1,
        ae_threshold=1.0,
        num_dets=[cfg["num_dets"] for cfg in level_cfgs],
        min_size=0,
    )
    results = post.forward(outs, image_sizes)
    jax.block_until_ready(results)

    # kernel == 3: also exercises the Pallas heatmap-NMS kernel.
    post3 = CornerNetPostProcessorPallas(
        nms_thresh=0.5,
        fpn_post_nms_top_n=20,
        strides=[cfg["stride"] for cfg in level_cfgs],
        K=[cfg["K"] for cfg in level_cfgs],
        kernel=3,
        ae_threshold=1.0,
        num_dets=[cfg["num_dets"] for cfg in level_cfgs],
        min_size=0,
    )
    results3 = post3.forward(outs, image_sizes)
    jax.block_until_ready(results3)

    print("KERNEL_OK")
</pallas_src>

<mosaic_0001>
module attributes {stable_mosaic.version = 11 : i64} {
  func.func @_decode_scores_kernel(%arg0: i32, %arg1: memref<1x128x7xf32, #tpu.memory_space<vmem>>, %arg2: memref<1x7x128xf32, #tpu.memory_space<vmem>>, %arg3: memref<1x128x128xf32, #tpu.memory_space<vmem>>) attributes {dimension_semantics = [#tpu.dimension_semantics<parallel>], iteration_bounds = array<i64: 2>, scalar_prefetch = 0 : i64, scratch_operands = 0 : i64, tpu.core_type = #tpu.core_type<tc>, window_params = [{transform_indices = @transform_0, window_bounds = array<i64: 1, 128, 7>}, {transform_indices = @transform_1, window_bounds = array<i64: 1, 7, 128>}, {transform_indices = @transform_2, window_bounds = array<i64: 1, 128, 128>}]} {
    %c0 = arith.constant 0 : index
    %c0_0 = arith.constant 0 : index
    %c0_1 = arith.constant 0 : index
    %0 = vector.load %arg1[%c0, %c0_0, %c0_1] : memref<1x128x7xf32, #tpu.memory_space<vmem>>, vector<1x128x7xf32>
    %c0_2 = arith.constant 0 : index
    %c0_3 = arith.constant 0 : index
    %c0_4 = arith.constant 0 : index
    %1 = vector.load %arg2[%c0_2, %c0_3, %c0_4] : memref<1x7x128xf32, #tpu.memory_space<vmem>>, vector<1x7x128xf32>
    %2 = vector.extract_strided_slice %0 {offsets = [0, 0, 0], sizes = [1, 128, 1], strides = [1, 1, 1]} : vector<1x128x7xf32> to vector<1x128x1xf32>
    %3 = vector.extract_strided_slice %0 {offsets = [0, 0, 1], sizes = [1, 128, 1], strides = [1, 1, 1]} : vector<1x128x7xf32> to vector<1x128x1xf32>
    %4 = vector.extract_strided_slice %0 {offsets = [0, 0, 2], sizes = [1, 128, 1], strides = [1, 1, 1]} : vector<1x128x7xf32> to vector<1x128x1xf32>
    %5 = vector.extract_strided_slice %0 {offsets = [0, 0, 3], sizes = [1, 128, 1], strides = [1, 1, 1]} : vector<1x128x7xf32> to vector<1x128x1xf32>
    %6 = vector.extract_strided_slice %0 {offsets = [0, 0, 4], sizes = [1, 128, 1], strides = [1, 1, 1]} : vector<1x128x7xf32> to vector<1x128x1xf32>
    %7 = vector.extract_strided_slice %0 {offsets = [0, 0, 5], sizes = [1, 128, 1], strides = [1, 1, 1]} : vector<1x128x7xf32> to vector<1x128x1xf32>
    %8 = vector.extract_strided_slice %0 {offsets = [0, 0, 6], sizes = [1, 128, 1], strides = [1, 1, 1]} : vector<1x128x7xf32> to vector<1x128x1xf32>
    %9 = vector.extract_strided_slice %1 {offsets = [0, 0, 0], sizes = [1, 1, 128], strides = [1, 1, 1]} : vector<1x7x128xf32> to vector<1x1x128xf32>
    %10 = vector.extract_strided_slice %1 {offsets = [0, 1, 0], sizes = [1, 1, 128], strides = [1, 1, 1]} : vector<1x7x128xf32> to vector<1x1x128xf32>
    %11 = vector.extract_strided_slice %1 {offsets = [0, 2, 0], sizes = [1, 1, 128], strides = [1, 1, 1]} : vector<1x7x128xf32> to vector<1x1x128xf32>
    %12 = vector.extract_strided_slice %1 {offsets = [0, 3, 0], sizes = [1, 1, 128], strides = [1, 1, 1]} : vector<1x7x128xf32> to vector<1x1x128xf32>
    %13 = vector.extract_strided_slice %1 {offsets = [0, 4, 0], sizes = [1, 1, 128], strides = [1, 1, 1]} : vector<1x7x128xf32> to vector<1x1x128xf32>
    %14 = vector.extract_strided_slice %1 {offsets = [0, 5, 0], sizes = [1, 1, 128], strides = [1, 1, 1]} : vector<1x7x128xf32> to vector<1x1x128xf32>
    %15 = vector.extract_strided_slice %1 {offsets = [0, 6, 0], sizes = [1, 1, 128], strides = [1, 1, 1]} : vector<1x7x128xf32> to vector<1x1x128xf32>
    %16 = arith.addf %4, %6 : vector<1x128x1xf32>
    %17 = arith.addf %3, %7 : vector<1x128x1xf32>
    %18 = arith.addf %11, %13 : vector<1x1x128xf32>
    %19 = arith.addf %10, %14 : vector<1x1x128xf32>
    %20 = vector.broadcast %2 : vector<1x128x1xf32> to vector<1x128x128xf32>
    %21 = vector.broadcast %9 : vector<1x1x128xf32> to vector<1x128x128xf32>
    %22 = arith.addf %20, %21 : vector<1x128x128xf32>
    %cst = arith.constant 5.000000e-01 : f32
    %23 = vector.broadcast %cst : f32 to vector<1x128x128xf32>
    %24 = arith.mulf %22, %23 : vector<1x128x128xf32>
    %25 = vector.broadcast %5 : vector<1x128x1xf32> to vector<1x128x128xf32>
    %26 = vector.broadcast %12 : vector<1x1x128xf32> to vector<1x128x128xf32>
    %27 = arith.subf %25, %26 : vector<1x128x128xf32>
    %28 = math.absf %27 : vector<1x128x128xf32>
    %29 = vector.broadcast %8 : vector<1x128x1xf32> to vector<1x128x128xf32>
    %30 = vector.broadcast %15 : vector<1x1x128xf32> to vector<1x128x128xf32>
    %31 = arith.cmpf one, %29, %30 : vector<1x128x128xf32>
    %cst_5 = arith.constant 1.000000e+00 : f32
    %32 = vector.broadcast %cst_5 : f32 to vector<1x128x128xf32>
    %33 = arith.cmpf ogt, %28, %32 : vector<1x128x128xf32>
    %34 = arith.ori %31, %33 : vector<1x128x128xi1>
    %35 = vector.broadcast %18 : vector<1x1x128xf32> to vector<1x128x128xf32>
    %36 = vector.broadcast %16 : vector<1x128x1xf32> to vector<1x128x128xf32>
    %37 = arith.cmpf olt, %35, %36 : vector<1x128x128xf32>
    %38 = arith.ori %34, %37 : vector<1x128x128xi1>
    %39 = vector.broadcast %19 : vector<1x1x128xf32> to vector<1x128x128xf32>
    %40 = vector.broadcast %17 : vector<1x128x1xf32> to vector<1x128x128xf32>
    %41 = arith.cmpf olt, %39, %40 : vector<1x128x128xf32>
    %42 = arith.ori %38, %41 : vector<1x128x128xi1>
    %cst_6 = arith.constant -1.000000e+00 : f32
    %43 = vector.broadcast %cst_6 : f32 to vector<1x128x128xf32>
    %44 = arith.select %42, %43, %24 : vector<1x128x128xi1>, vector<1x128x128xf32>
    %45 = tpu.iota {dimensions = array<i32: 1>} : vector<1x128x1xi32>
    %46 = tpu.iota {dimensions = array<i32: 2>} : vector<1x1x128xi32>
    %c8_i32 = arith.constant 8 : i32
    %47 = vector.broadcast %c8_i32 : i32 to vector<1x128x1xi32>
    %48 = arith.cmpi sge, %45, %47 : vector<1x128x1xi32>
    %c8_i32_7 = arith.constant 8 : i32
    %49 = vector.broadcast %c8_i32_7 : i32 to vector<1x1x128xi32>
    %50 = arith.cmpi sge, %46, %49 : vector<1x1x128xi32>
    %51 = vector.broadcast %48 : vector<1x128x1xi1> to vector<1x128x128xi1>
    %52 = vector.broadcast %50 : vector<1x1x128xi1> to vector<1x128x128xi1>
    %53 = arith.ori %51, %52 : vector<1x128x128xi1>
    %cst_8 = arith.constant -1.000000e+30 : f32
    %54 = vector.broadcast %cst_8 : f32 to vector<1x128x128xf32>
    %55 = arith.select %53, %54, %44 : vector<1x128x128xi1>, vector<1x128x128xf32>
    %c0_9 = arith.constant 0 : index
    %c0_10 = arith.constant 0 : index
    %c0_11 = arith.constant 0 : index
    %56 = vector.load %arg3[%c0_9, %c0_10, %c0_11] : memref<1x128x128xf32, #tpu.memory_space<vmem>>, vector<1x128x128xf32>
    tpu.vector_store %arg3[%c0_9, %c0_10, %c0_11], %55 {strides = array<i32>} : memref<1x128x128xf32, #tpu.memory_space<vmem>>, vector<1x128x128xf32>,
    return
  }
  func.func @transform_0(%arg0: i32) -> (i32, i32, i32) {
    %c0_i32 = arith.constant 0 : i32
    %c0_i32_0 = arith.constant 0 : i32
    %c0_i32_1 = arith.constant 0 : i32
    return %arg0, %c0_i32, %c0_i32_0 : i32, i32, i32
  }
  func.func @transform_1(%arg0: i32) -> (i32, i32, i32) {
    %c0_i32 = arith.constant 0 : i32
    %c0_i32_0 = arith.constant 0 : i32
    %c0_i32_1 = arith.constant 0 : i32
    return %arg0, %c0_i32, %c0_i32_0 : i32, i32, i32
  }
  func.func @transform_2(%arg0: i32) -> (i32, i32, i32) {
    %c0_i32 = arith.constant 0 : i32
    %c0_i32_0 = arith.constant 0 : i32
    %c0_i32_1 = arith.constant 0 : i32
    return %arg0, %c0_i32, %c0_i32_0 : i32, i32, i32
  }
}

</mosaic_0001>

<llo_original>
// kernel: tpu_custom_call.1
$region0: #{tpu_custom_call.1}
  #allocation0 [shape = 'u32[]', space=smem, size = 0x4, offset = 0x4, fixed_abs, tag = 'smem constant byte address 0x4 - core index']
  #allocation1 [shape = 'u32[144,128]{1,0:T(1,128)}', space=vmem, size = 0x12000, scoped, tag = 'internal scratch']
  %s0 = inlined_call_operand.vmem [shape: f32[2,128,7], index: 0, kind: input, shape index: {}]
  %s1 = inlined_call_operand.vmem [shape: f32[2,7,128], index: 1, kind: input, shape index: {}]
  %s2 = inlined_call_operand.hbm [shape: f32[2,128,128], index: 2, kind: output, shape index: {}]
  %s3 = sld [smem:[#allocation0]]
  $region41: #{tpu_custom_call.1} parent=0
    _
  %s5 = ssub.s32 1, %s3
  %s6 = scalar_select 0, %s5, %s3
  $region1: #{tpu_custom_call.1} parent=0
    #allocation2 [shape = 'u8[131072]{0}', space=vmem, size = 0x20000, scoped, tag = 'output window, operand 0']
    #allocation3 [shape = 's32[2]{0}', space=sflag, size = 0x8, scoped, tag = 'scoped memory for tpu_custom_call.1']
    %7 = vsyncpa [#allocation3], 0
    %s8 = scalar_lea.sflag [#allocation3], 1
    %9 = vsyncpa %s8, 0
    loop: start=0, step=1, limit=4
    $region2: #{tpu_custom_call.1} parent=1 // loop_pre_header
      _
    $region3: #{tpu_custom_call.1} parent=1 // loop_header
      %s11 = sphi 0, %s15
      %p12 = scmp.ge.s32.totalorder %s11, 4
      %s21 = sphi 0, %s23
      %s24 = sphi 0, %s21
      %s25 = sphi 0, %s24
      %s41 = sphi 0, %s25
      %s47 = sphi 0, %s49
      %s50 = sphi 0, %s47
      %s51 = sphi 0, %s50
      %s67 = sphi 0, %s51
      %s73 = sphi 0, %s75
      %s76 = sphi 0, %s73
      %s77 = sphi 0, %s76
      %s93 = sphi 0, %s77
    $region4: #{tpu_custom_call.1} parent=1 // loop_header_branch
      %14 = sbr.rel (%p12) target = $region8
    $region5: #{tpu_custom_call.1} parent=1 // loop_body
      %s16 = ssub.s32 %s11, 1
      %s17 = ssub.s32 %s11, 2
      %s18 = sadd.s32 %s11, 1
      %s19 = ssub.s32 %s11, %s18
      %p20 = scmp.eq.s32.totalorder %s19, 0
      %s22 = sadd.s32 %s21, 1
      %s23 = scalar_select %p20, %s21, %s22
      %p26 = pneg %p20
      %p27 = scmp.eq.s32.totalorder %s11, 1
      %p28 = por %p26, %p27
      %p29 = scmp.ne.s32.totalorder %s21, %s24
      %p30 = scmp.eq.s32.totalorder %s11, 0
      %p31 = por %p29, %p30
      %p32 = scmp.ne.s32.totalorder %s21, %s24
      %p33 = scmp.eq.s32.totalorder %s16, 1
      %p34 = por %p32, %p33
      %p35 = scmp.ne.s32.totalorder %s24, %s25
      %p36 = scmp.eq.s32.totalorder %s16, 0
      %p37 = por %p35, %p36
      %p38 = scmp.ne.s32.totalorder %s24, %s25
      %p39 = scmp.eq.s32.totalorder %s17, 1
      %p40 = por %p38, %p39
      %p42 = scmp.ne.s32.totalorder %s25, %s41
      %p43 = scmp.eq.s32.totalorder %s17, 0
      %p44 = por %p42, %p43
      %s45 = ssub.s32 %s11, %s18
      %p46 = scmp.eq.s32.totalorder %s45, 0
      %s48 = sadd.s32 %s47, 1
      %s49 = scalar_select %p46, %s47, %s48
      %p52 = pneg %p46
      %p53 = scmp.eq.s32.totalorder %s11, 1
      %p54 = por %p52, %p53
      %p55 = scmp.ne.s32.totalorder %s47, %s50
      %p56 = scmp.eq.s32.totalorder %s11, 0
      %p57 = por %p55, %p56
      %p58 = scmp.ne.s32.totalorder %s47, %s50
      %p59 = scmp.eq.s32.totalorder %s16, 1
      %p60 = por %p58, %p59
      %p61 = scmp.ne.s32.totalorder %s50, %s51
      %p62 = scmp.eq.s32.totalorder %s16, 0
      %p63 = por %p61, %p62
      %p64 = scmp.ne.s32.totalorder %s50, %s51
      %p65 = scmp.eq.s32.totalorder %s17, 1
      %p66 = por %p64, %p65
      %p68 = scmp.ne.s32.totalorder %s51, %s67
      %p69 = scmp.eq.s32.totalorder %s17, 0
      %p70 = por %p68, %p69
      %s71 = ssub.s32 %s11, %s18
      %p72 = scmp.eq.s32.totalorder %s71, 0
      %s74 = sadd.s32 %s73, 1
      %s75 = scalar_select %p72, %s73, %s74
      %p78 = pneg %p72
      %p79 = scmp.eq.s32.totalorder %s11, 1
      %p80 = por %p78, %p79
      %p81 = scmp.ne.s32.totalorder %s73, %s76
      %p82 = scmp.eq.s32.totalorder %s11, 0
      %p83 = por %p81, %p82
      %p84 = scmp.ne.s32.totalorder %s73, %s76
      %p85 = scmp.eq.s32.totalorder %s16, 1
      %p86 = por %p84, %p85
      %p87 = scmp.ne.s32.totalorder %s76, %s77
      %p88 = scmp.eq.s32.totalorder %s16, 0
      %p89 = por %p87, %p88
      %p90 = scmp.ne.s32.totalorder %s76, %s77
      %p91 = scmp.eq.s32.totalorder %s17, 1
      %p92 = por %p90, %p91
      %p94 = scmp.ne.s32.totalorder %s77, %s93
      %p95 = scmp.eq.s32.totalorder %s17, 0
      %p96 = por %p94, %p95
      %p97 = scmp.le.s32.totalorder 1, %s11
      %p98 = scmp.lt.s32.totalorder %s11, 3
      %p99 = pnand %p97, %p98
      %p100 = pneg %p99
      // Predicated region
      $region9: #{tpu_custom_call.1} parent=5 // pred_check
        _
      $region10: #{tpu_custom_call.1} parent=5 // pred_check_branch
        %102 = sbr.rel (%p99) target = $region12
      $region11: #{tpu_custom_call.1} parent=5 // pred_region
        %s103 = ssub.s32 %s11, 1
      $region12: #{tpu_custom_call.1} parent=5 // pred_fallthru
        _
      %p104 = scmp.lt.s32.totalorder %s11, 2
      // Predicated region
      $region13: #{tpu_custom_call.1} parent=5 // pred_check
        %p105 = pneg %p104
      $region14: #{tpu_custom_call.1} parent=5 // pred_check_branch
        %107 = sbr.rel (%p105) target = $region16
      $region15: #{tpu_custom_call.1} parent=5 // pred_region
        // Predicated region
        $region17: #{tpu_custom_call.1} parent=15 // pred_check
          %p108 = pneg %p31
        $region18: #{tpu_custom_call.1} parent=15 // pred_check_branch
          %110 = sbr.rel (%p108) target = $region20
        $region19: #{tpu_custom_call.1} parent=15 // pred_region
          %p111 = scmp.lt.s32.totalorder %s11, 1
          %s112 = scalar_select %p111, %s11, 1
          %s113 = smul.addr %s112, 16
          %s114 = smul.addr %s113, 8
          %s115 = scalar_lea.vmem %s0, %s114
        $region20: #{tpu_custom_call.1} parent=15 // pred_fallthru
          _
        // Predicated region
        $region21: #{tpu_custom_call.1} parent=15 // pred_check
          %p116 = pneg %p57
        $region22: #{tpu_custom_call.1} parent=15 // pred_check_branch
          %118 = sbr.rel (%p116) target = $region24
        $region23: #{tpu_custom_call.1} parent=15 // pred_region
          %p119 = scmp.lt.s32.totalorder %s11, 1
          %s120 = scalar_select %p119, %s11, 1
          %s121 = smul.addr %s120, 8
          %s122 = scalar_lea.vmem %s1, %s121
        $region24: #{tpu_custom_call.1} parent=15 // pred_fallthru
          _
      $region16: #{tpu_custom_call.1} parent=5 // pred_fallthru
        _
      %p123 = scmp.le.s32.totalorder 1, %s11
      %p124 = scmp.lt.s32.totalorder %s11, 3
      %p125 = pnand %p123, %p124
      %p126 = pneg %p125
      // Predicated region
      $region25: #{tpu_custom_call.1} parent=5 // pred_check
        _
      $region26: #{tpu_custom_call.1} parent=5 // pred_check_branch
        %128 = sbr.rel (%p125) target = $region28
      $region27: #{tpu_custom_call.1} parent=5 // pred_region
        %s129 = ssub.s32 %s11, 1
        %p130 = scmp.lt.s32.totalorder %s16, 1
        %s131 = scalar_select %p130, %s16, 1
        %s132 = smul.addr %s131, 16
        %s133 = smul.addr %s132, 8
        %s134 = scalar_lea.vmem %s0, %s133
        %p135 = pneg %p37
        %p136 = pneg %p34
        %p137 = scmp.lt.s32.totalorder %s16, 1
        %s138 = scalar_select %p137, %s16, 1
        %s139 = smul.addr %s138, 8
        %s140 = scalar_lea.vmem %s1, %s139
        %p141 = pneg %p63
        %p142 = pneg %p60
        %p143 = pneg %p89
        %p144 = pneg %p86
        %s145 = sand.u32 %s76, 1
        %s146 = scalar_lea.sflag [#allocation3], %s145
        %s147 = sand.u32 %s76, 1
        %s148 = smul.addr %s147, 128
        %s149 = scalar_lea.vmem [#allocation2], %s148
        %p150 = scmp.lt.s32.totalorder %s16, 1
        %s151 = scalar_select %p150, %s16, 1
        %s152 = smul.addr %s151, 16
        %s153 = smul.addr %s152, 8
        %s154 = scalar_lea.vmem %s0, %s153
        %p155 = scmp.lt.s32.totalorder %s16, 1
        %s156 = scalar_select %p155, %s16, 1
        %s157 = smul.addr %s156, 8
        %s158 = scalar_lea.vmem %s1, %s157
        %v159 = vld [vmem:[%s154] sm:$0xff]
        %v160 = vld [vmem:[%s154 + $0x8] sm:$0xff]
        %v161 = vld [vmem:[%s154 + $0x10] sm:$0xff]
        %v162 = vld [vmem:[%s154 + $0x18] sm:$0xff]
        %v163 = vld [vmem:[%s154 + $0x20] sm:$0xff]
        %v164 = vld [vmem:[%s154 + $0x28] sm:$0xff]
        %v165 = vld [vmem:[%s154 + $0x30] sm:$0xff]
        %v166 = vld [vmem:[%s154 + $0x38] sm:$0xff]
        %v167 = vld [vmem:[%s154 + $0x40] sm:$0xff]
        %v168 = vld [vmem:[%s154 + $0x48] sm:$0xff]
        %v169 = vld [vmem:[%s154 + $0x50] sm:$0xff]
        %v170 = vld [vmem:[%s154 + $0x58] sm:$0xff]
        %v171 = vld [vmem:[%s154 + $0x60] sm:$0xff]
        %v172 = vld [vmem:[%s154 + $0x68] sm:$0xff]
        %v173 = vld [vmem:[%s154 + $0x70] sm:$0xff]
        %v174 = vld [vmem:[%s154 + $0x78] sm:$0xff]
        %v175 = vld [vmem:[%s158] sm:$0x7f]
        %192 = vrot.lane.b32.xlu0 %v159, 126
        %v193 = vpop.permute.xlu0 %192
        %194 = vrot.lane.b32.xlu0 %v160, 126
        %v195 = vpop.permute.xlu0 %194
        %196 = vrot.lane.b32.xlu0 %v161, 126
        %v197 = vpop.permute.xlu0 %196
        %198 = vrot.lane.b32.xlu0 %v162, 126
        %v199 = vpop.permute.xlu0 %198
        %200 = vrot.lane.b32.xlu0 %v163, 126
        %v201 = vpop.permute.xlu0 %200
        %202 = vrot.lane.b32.xlu0 %v164, 126
        %v203 = vpop.permute.xlu0 %202
        %204 = vrot.lane.b32.xlu0 %v165, 126
        %v205 = vpop.permute.xlu0 %204
        %206 = vrot.lane.b32.xlu0 %v166, 126
        %v207 = vpop.permute.xlu0 %206
        %208 = vrot.lane.b32.xlu0 %v167, 126
        %v209 = vpop.permute.xlu0 %208
        %210 = vrot.lane.b32.xlu0 %v168, 126
        %v211 = vpop.permute.xlu0 %210
        %212 = vrot.lane.b32.xlu0 %v169, 126
        %v213 = vpop.permute.xlu0 %212
        %214 = vrot.lane.b32.xlu0 %v170, 126
        %v215 = vpop.permute.xlu0 %214
        %216 = vrot.lane.b32.xlu0 %v171, 126
        %v217 = vpop.permute.xlu0 %216
        %218 = vrot.lane.b32.xlu0 %v172, 126
        %v219 = vpop.permute.xlu0 %218
        %220 = vrot.lane.b32.xlu0 %v173, 126
        %v221 = vpop.permute.xlu0 %220
        %222 = vrot.lane.b32.xlu0 %v174, 126
        %v223 = vpop.permute.xlu0 %222
        %v240 = vadd.f32 %v159, %v193
        %v241 = vadd.f32 %v160, %v195
        %v242 = vadd.f32 %v161, %v197
        %v243 = vadd.f32 %v162, %v199
        %v244 = vadd.f32 %v163, %v201
        %v245 = vadd.f32 %v164, %v203
        %v246 = vadd.f32 %v165, %v205
        %v247 = vadd.f32 %v166, %v207
        %v248 = vadd.f32 %v167, %v209
        %v249 = vadd.f32 %v168, %v211
        %v250 = vadd.f32 %v169, %v213
        %v251 = vadd.f32 %v170, %v215
        %v252 = vadd.f32 %v171, %v217
        %v253 = vadd.f32 %v172, %v219
        %v254 = vadd.f32 %v173, %v221
        %v255 = vadd.f32 %v174, %v223
        %256 = vrot.lane.b32.xlu0 %v159, 124
        %v257 = vpop.permute.xlu0 %256
        %258 = vrot.lane.b32.xlu0 %v160, 124
        %v259 = vpop.permute.xlu0 %258
        %260 = vrot.lane.b32.xlu0 %v161, 124
        %v261 = vpop.permute.xlu0 %260
        %262 = vrot.lane.b32.xlu0 %v162, 124
        %v263 = vpop.permute.xlu0 %262
        %264 = vrot.lane.b32.xlu0 %v163, 124
        %v265 = vpop.permute.xlu0 %264
        %266 = vrot.lane.b32.xlu0 %v164, 124
        %v267 = vpop.permute.xlu0 %266
        %268 = vrot.lane.b32.xlu0 %v165, 124
        %v269 = vpop.permute.xlu0 %268
        %270 = vrot.lane.b32.xlu0 %v166, 124
        %v271 = vpop.permute.xlu0 %270
        %272 = vrot.lane.b32.xlu0 %v167, 124
        %v273 = vpop.permute.xlu0 %272
        %274 = vrot.lane.b32.xlu0 %v168, 124
        %v275 = vpop.permute.xlu0 %274
        %276 = vrot.lane.b32.xlu0 %v169, 124
        %v277 = vpop.permute.xlu0 %276
        %278 = vrot.lane.b32.xlu0 %v170, 124
        %v279 = vpop.permute.xlu0 %278
        %280 = vrot.lane.b32.xlu0 %v171, 124
        %v281 = vpop.permute.xlu0 %280
        %282 = vrot.lane.b32.xlu0 %v172, 124
        %v283 = vpop.permute.xlu0 %282
        %284 = vrot.lane.b32.xlu0 %v173, 124
        %v285 = vpop.permute.xlu0 %284
        %286 = vrot.lane.b32.xlu0 %v174, 124
        %v287 = vpop.permute.xlu0 %286
        %v304 = vadd.f32 %v159, %v257
        %v305 = vadd.f32 %v160, %v259
        %v306 = vadd.f32 %v161, %v261
        %v307 = vadd.f32 %v162, %v263
        %v308 = vadd.f32 %v163, %v265
        %v309 = vadd.f32 %v164, %v267
        %v310 = vadd.f32 %v165, %v269
        %v311 = vadd.f32 %v166, %v271
        %v312 = vadd.f32 %v167, %v273
        %v313 = vadd.f32 %v168, %v275
        %v314 = vadd.f32 %v169, %v277
        %v315 = vadd.f32 %v170, %v279
        %v316 = vadd.f32 %v171, %v281
        %v317 = vadd.f32 %v172, %v283
        %v318 = vadd.f32 %v173, %v285
        %v319 = vadd.f32 %v174, %v287
        %v321 = vrot.slane %v175, 2
        %v323 = vadd.f32 %v175, %v321
        %v324 = vrot.slane %v175, 4
        %v326 = vadd.f32 %v175, %v324
        %327 = vset.pattern.permute.xlu0 0
        %328 = vperm.xlu0 %327, %v159
        %v329 = vpop.permute.xlu0 %328
        %331 = vset.pattern.permute.xlu0 0
        %332 = vperm.xlu0 %331, %v160
        %v333 = vpop.permute.xlu0 %332
        %335 = vset.pattern.permute.xlu0 0
        %336 = vperm.xlu0 %335, %v161
        %v337 = vpop.permute.xlu0 %336
        %339 = vset.pattern.permute.xlu0 0
        %340 = vperm.xlu0 %339, %v162
        %v341 = vpop.permute.xlu0 %340
        %343 = vset.pattern.permute.xlu0 0
        %344 = vperm.xlu0 %343, %v163
        %v345 = vpop.permute.xlu0 %344
        %347 = vset.pattern.permute.xlu0 0
        %348 = vperm.xlu0 %347, %v164
        %v349 = vpop.permute.xlu0 %348
        %351 = vset.pattern.permute.xlu0 0
        %352 = vperm.xlu0 %351, %v165
        %v353 = vpop.permute.xlu0 %352
        %355 = vset.pattern.permute.xlu0 0
        %356 = vperm.xlu0 %355, %v166
        %v357 = vpop.permute.xlu0 %356
        %359 = vset.pattern.permute.xlu0 0
        %360 = vperm.xlu0 %359, %v167
        %v361 = vpop.permute.xlu0 %360
        %363 = vset.pattern.permute.xlu0 0
        %364 = vperm.xlu0 %363, %v168
        %v365 = vpop.permute.xlu0 %364
        %367 = vset.pattern.permute.xlu0 0
        %368 = vperm.xlu0 %367, %v169
        %v369 = vpop.permute.xlu0 %368
        %371 = vset.pattern.permute.xlu0 0
        %372 = vperm.xlu0 %371, %v170
        %v373 = vpop.permute.xlu0 %372
        %375 = vset.pattern.permute.xlu0 0
        %376 = vperm.xlu0 %375, %v171
        %v377 = vpop.permute.xlu0 %376
        %379 = vset.pattern.permute.xlu0 0
        %380 = vperm.xlu0 %379, %v172
        %v381 = vpop.permute.xlu0 %380
        %383 = vset.pattern.permute.xlu0 0
        %384 = vperm.xlu0 %383, %v173
        %v385 = vpop.permute.xlu0 %384
        %387 = vset.pattern.permute.xlu0 0
        %388 = vperm.xlu0 %387, %v174
        %v389 = vpop.permute.xlu0 %388
        %v391 = vlaneseq
        %v392 = vshrl.u32 %v391, 7
        %v393 = vsub.s32 0, %v392
        %v394 = vrot.slane %v175, %v393
        %v395 = vadd.f32 %v329, %v394
        %v396 = vadd.f32 %v333, %v394
        %v397 = vadd.f32 %v337, %v394
        %v398 = vadd.f32 %v341, %v394
        %v399 = vadd.f32 %v345, %v394
        %v400 = vadd.f32 %v349, %v394
        %v401 = vadd.f32 %v353, %v394
        %v402 = vadd.f32 %v357, %v394
        %v403 = vadd.f32 %v361, %v394
        %v404 = vadd.f32 %v365, %v394
        %v405 = vadd.f32 %v369, %v394
        %v406 = vadd.f32 %v373, %v394
        %v407 = vadd.f32 %v377, %v394
        %v408 = vadd.f32 %v381, %v394
        %v409 = vadd.f32 %v385, %v394
        %v410 = vadd.f32 %v389, %v394
        %v411 = vmul.f32 %v395, 0.5
        %v412 = vmul.f32 %v396, 0.5
        %v413 = vmul.f32 %v397, 0.5
        %v414 = vmul.f32 %v398, 0.5
        %v415 = vmul.f32 %v399, 0.5
        %v416 = vmul.f32 %v400, 0.5
        %v417 = vmul.f32 %v401, 0.5
        %v418 = vmul.f32 %v402, 0.5
        %v419 = vmul.f32 %v403, 0.5
        %v420 = vmul.f32 %v404, 0.5
        %v421 = vmul.f32 %v405, 0.5
        %v422 = vmul.f32 %v406, 0.5
        %v423 = vmul.f32 %v407, 0.5
        %v424 = vmul.f32 %v408, 0.5
        %v425 = vmul.f32 %v409, 0.5
        %v426 = vmul.f32 %v410, 0.5
        %427 = vset.pattern.permute.xlu0 3
        %428 = vperm.xlu0 %427, %v159
        %v429 = vpop.permute.xlu0 %428
        %431 = vset.pattern.permute.xlu0 3
        %432 = vperm.xlu0 %431, %v160
        %v433 = vpop.permute.xlu0 %432
        %435 = vset.pattern.permute.xlu0 3
        %436 = vperm.xlu0 %435, %v161
        %v437 = vpop.permute.xlu0 %436
        %439 = vset.pattern.permute.xlu0 3
        %440 = vperm.xlu0 %439, %v162
        %v441 = vpop.permute.xlu0 %440
        %443 = vset.pattern.permute.xlu0 3
        %444 = vperm.xlu0 %443, %v163
        %v445 = vpop.permute.xlu0 %444
        %447 = vset.pattern.permute.xlu0 3
        %448 = vperm.xlu0 %447, %v164
        %v449 = vpop.permute.xlu0 %448
        %451 = vset.pattern.permute.xlu0 3
        %452 = vperm.xlu0 %451, %v165
        %v453 = vpop.permute.xlu0 %452
        %455 = vset.pattern.permute.xlu0 3
        %456 = vperm.xlu0 %455, %v166
        %v457 = vpop.permute.xlu0 %456
        %459 = vset.pattern.permute.xlu0 3
        %460 = vperm.xlu0 %459, %v167
        %v461 = vpop.permute.xlu0 %460
        %463 = vset.pattern.permute.xlu0 3
        %464 = vperm.xlu0 %463, %v168
        %v465 = vpop.permute.xlu0 %464
        %467 = vset.pattern.permute.xlu0 3
        %468 = vperm.xlu0 %467, %v169
        %v469 = vpop.permute.xlu0 %468
        %471 = vset.pattern.permute.xlu0 3
        %472 = vperm.xlu0 %471, %v170
        %v473 = vpop.permute.xlu0 %472
        %475 = vset.pattern.permute.xlu0 3
        %476 = vperm.xlu0 %475, %v171
        %v477 = vpop.permute.xlu0 %476
        %479 = vset.pattern.permute.xlu0 3
        %480 = vperm.xlu0 %479, %v172
        %v481 = vpop.permute.xlu0 %480
        %483 = vset.pattern.permute.xlu0 3
        %484 = vperm.xlu0 %483, %v173
        %v485 = vpop.permute.xlu0 %484
        %487 = vset.pattern.permute.xlu0 3
        %488 = vperm.xlu0 %487, %v174
        %v489 = vpop.permute.xlu0 %488
        %v491 = vlaneseq
        %v492 = vshrl.u32 %v491, 7
        %v493 = vsub.s32 3, %v492
        %v494 = vrot.slane %v175, %v493
        %v495 = vsub.f32 %v429, %v494
        %v496 = vsub.f32 %v433, %v494
        %v497 = vsub.f32 %v437, %v494
        %v498 = vsub.f32 %v441, %v494
        %v499 = vsub.f32 %v445, %v494
        %v500 = vsub.f32 %v449, %v494
        %v501 = vsub.f32 %v453, %v494
        %v502 = vsub.f32 %v457, %v494
        %v503 = vsub.f32 %v461, %v494
        %v504 = vsub.f32 %v465, %v494
        %v505 = vsub.f32 %v469, %v494
        %v506 = vsub.f32 %v473, %v494
        %v507 = vsub.f32 %v477, %v494
        %v508 = vsub.f32 %v481, %v494
        %v509 = vsub.f32 %v485, %v494
        %v510 = vsub.f32 %v489, %v494
        %v511 = vand.u32 2147483647, %v495
        %v512 = vand.u32 2147483647, %v496
        %v513 = vand.u32 2147483647, %v497
        %v514 = vand.u32 2147483647, %v498
        %v515 = vand.u32 2147483647, %v499
        %v516 = vand.u32 2147483647, %v500
        %v517 = vand.u32 2147483647, %v501
        %v518 = vand.u32 2147483647, %v502
        %v519 = vand.u32 2147483647, %v503
        %v520 = vand.u32 2147483647, %v504
        %v521 = vand.u32 2147483647, %v505
        %v522 = vand.u32 2147483647, %v506
        %v523 = vand.u32 2147483647, %v507
        %v524 = vand.u32 2147483647, %v508
        %v525 = vand.u32 2147483647, %v509
        %v526 = vand.u32 2147483647, %v510
        %527 = vset.pattern.permute.xlu0 6
        %528 = vperm.xlu0 %527, %v159
        %v529 = vpop.permute.xlu0 %528
        %531 = vset.pattern.permute.xlu0 6
        %532 = vperm.xlu0 %531, %v160
        %v533 = vpop.permute.xlu0 %532
        %535 = vset.pattern.permute.xlu0 6
        %536 = vperm.xlu0 %535, %v161
        %v537 = vpop.permute.xlu0 %536
        %539 = vset.pattern.permute.xlu0 6
        %540 = vperm.xlu0 %539, %v162
        %v541 = vpop.permute.xlu0 %540
        %543 = vset.pattern.permute.xlu0 6
        %544 = vperm.xlu0 %543, %v163
        %v545 = vpop.permute.xlu0 %544
        %547 = vset.pattern.permute.xlu0 6
        %548 = vperm.xlu0 %547, %v164
        %v549 = vpop.permute.xlu0 %548
        %551 = vset.pattern.permute.xlu0 6
        %552 = vperm.xlu0 %551, %v165
        %v553 = vpop.permute.xlu0 %552
        %555 = vset.pattern.permute.xlu0 6
        %556 = vperm.xlu0 %555, %v166
        %v557 = vpop.permute.xlu0 %556
        %559 = vset.pattern.permute.xlu0 6
        %560 = vperm.xlu0 %559, %v167
        %v561 = vpop.permute.xlu0 %560
        %563 = vset.pattern.permute.xlu0 6
        %564 = vperm.xlu0 %563, %v168
        %v565 = vpop.permute.xlu0 %564
        %567 = vset.pattern.permute.xlu0 6
        %568 = vperm.xlu0 %567, %v169
        %v569 = vpop.permute.xlu0 %568
        %571 = vset.pattern.permute.xlu0 6
        %572 = vperm.xlu0 %571, %v170
        %v573 = vpop.permute.xlu0 %572
        %575 = vset.pattern.permute.xlu0 6
        %576 = vperm.xlu0 %575, %v171
        %v577 = vpop.permute.xlu0 %576
        %579 = vset.pattern.permute.xlu0 6
        %580 = vperm.xlu0 %579, %v172
        %v581 = vpop.permute.xlu0 %580
        %583 = vset.pattern.permute.xlu0 6
        %584 = vperm.xlu0 %583, %v173
        %v585 = vpop.permute.xlu0 %584
        %587 = vset.pattern.permute.xlu0 6
        %588 = vperm.xlu0 %587, %v174
        %v589 = vpop.permute.xlu0 %588
        %v591 = vlaneseq
        %v592 = vshrl.u32 %v591, 7
        %v593 = vsub.s32 6, %v592
        %v594 = vrot.slane %v175, %v593
        %vm595 = vcmp.ne.f32.partialorder %v529, %v594
        %vm596 = vcmp.ne.f32.partialorder %v533, %v594
        %vm597 = vcmp.ne.f32.partialorder %v537, %v594
        %vm598 = vcmp.ne.f32.partialorder %v541, %v594
        %vm599 = vcmp.ne.f32.partialorder %v545, %v594
        %vm600 = vcmp.ne.f32.partialorder %v549, %v594
        %vm601 = vcmp.ne.f32.partialorder %v553, %v594
        %vm602 = vcmp.ne.f32.partialorder %v557, %v594
        %vm603 = vcmp.ne.f32.partialorder %v561, %v594
        %vm604 = vcmp.ne.f32.partialorder %v565, %v594
        %vm605 = vcmp.ne.f32.partialorder %v569, %v594
        %vm606 = vcmp.ne.f32.partialorder %v573, %v594
        %vm607 = vcmp.ne.f32.partialorder %v577, %v594
        %vm608 = vcmp.ne.f32.partialorder %v581, %v594
        %vm609 = vcmp.ne.f32.partialorder %v585, %v594
        %vm610 = vcmp.ne.f32.partialorder %v589, %v594
        %vm611 = vcmp.gt.f32.partialorder %v511, 1.0
        %vm612 = vcmp.gt.f32.partialorder %v512, 1.0
        %vm613 = vcmp.gt.f32.partialorder %v513, 1.0
        %vm614 = vcmp.gt.f32.partialorder %v514, 1.0
        %vm615 = vcmp.gt.f32.partialorder %v515, 1.0
        %vm616 = vcmp.gt.f32.partialorder %v516, 1.0
        %vm617 = vcmp.gt.f32.partialorder %v517, 1.0
        %vm618 = vcmp.gt.f32.partialorder %v518, 1.0
        %vm619 = vcmp.gt.f32.partialorder %v519, 1.0
        %vm620 = vcmp.gt.f32.partialorder %v520, 1.0
        %vm621 = vcmp.gt.f32.partialorder %v521, 1.0
        %vm622 = vcmp.gt.f32.partialorder %v522, 1.0
        %vm623 = vcmp.gt.f32.partialorder %v523, 1.0
        %vm624 = vcmp.gt.f32.partialorder %v524, 1.0
        %vm625 = vcmp.gt.f32.partialorder %v525, 1.0
        %vm626 = vcmp.gt.f32.partialorder %v526, 1.0
        %vm627 = vmor %vm595, %vm611
        %vm628 = vmor %vm596, %vm612
        %vm629 = vmor %vm597, %vm613
        %vm630 = vmor %vm598, %vm614
        %vm631 = vmor %vm599, %vm615
        %vm632 = vmor %vm600, %vm616
        %vm633 = vmor %vm601, %vm617
        %vm634 = vmor %vm602, %vm618
        %vm635 = vmor %vm603, %vm619
        %vm636 = vmor %vm604, %vm620
        %vm637 = vmor %vm605, %vm621
        %vm638 = vmor %vm606, %vm622
        %vm639 = vmor %vm607, %vm623
        %vm640 = vmor %vm608, %vm624
        %vm641 = vmor %vm609, %vm625
        %vm642 = vmor %vm610, %vm626
        %v643 = vlaneseq
        %v644 = vshrl.u32 %v643, 7
        %v645 = vsub.s32 2, %v644
        %v646 = vrot.slane %v323, %v645
        %648 = vset.pattern.permute.xlu0 2
        %649 = vperm.xlu0 %648, %v240
        %v650 = vpop.permute.xlu0 %649
        %653 = vset.pattern.permute.xlu0 2
        %654 = vperm.xlu0 %653, %v241
        %v655 = vpop.permute.xlu0 %654
        %658 = vset.pattern.permute.xlu0 2
        %659 = vperm.xlu0 %658, %v242
        %v660 = vpop.permute.xlu0 %659
        %663 = vset.pattern.permute.xlu0 2
        %664 = vperm.xlu0 %663, %v243
        %v665 = vpop.permute.xlu0 %664
        %668 = vset.pattern.permute.xlu0 2
        %669 = vperm.xlu0 %668, %v244
        %v670 = vpop.permute.xlu0 %669
        %673 = vset.pattern.permute.xlu0 2
        %674 = vperm.xlu0 %673, %v245
        %v675 = vpop.permute.xlu0 %674
        %678 = vset.pattern.permute.xlu0 2
        %679 = vperm.xlu0 %678, %v246
        %v680 = vpop.permute.xlu0 %679
        %683 = vset.pattern.permute.xlu0 2
        %684 = vperm.xlu0 %683, %v247
        %v685 = vpop.permute.xlu0 %684
        %688 = vset.pattern.permute.xlu0 2
        %689 = vperm.xlu0 %688, %v248
        %v690 = vpop.permute.xlu0 %689
        %693 = vset.pattern.permute.xlu0 2
        %694 = vperm.xlu0 %693, %v249
        %v695 = vpop.permute.xlu0 %694
        %698 = vset.pattern.permute.xlu0 2
        %699 = vperm.xlu0 %698, %v250
        %v700 = vpop.permute.xlu0 %699
        %703 = vset.pattern.permute.xlu0 2
        %704 = vperm.xlu0 %703, %v251
        %v705 = vpop.permute.xlu0 %704
        %708 = vset.pattern.permute.xlu0 2
        %709 = vperm.xlu0 %708, %v252
        %v710 = vpop.permute.xlu0 %709
        %713 = vset.pattern.permute.xlu0 2
        %714 = vperm.xlu0 %713, %v253
        %v715 = vpop.permute.xlu0 %714
        %718 = vset.pattern.permute.xlu0 2
        %719 = vperm.xlu0 %718, %v254
        %v720 = vpop.permute.xlu0 %719
        %723 = vset.pattern.permute.xlu0 2
        %724 = vperm.xlu0 %723, %v255
        %v725 = vpop.permute.xlu0 %724
        %vm727 = vcmp.lt.f32.partialorder %v646, %v650
        %vm728 = vcmp.lt.f32.partialorder %v646, %v655
        %vm729 = vcmp.lt.f32.partialorder %v646, %v660
        %vm730 = vcmp.lt.f32.partialorder %v646, %v665
        %vm731 = vcmp.lt.f32.partialorder %v646, %v670
        %vm732 = vcmp.lt.f32.partialorder %v646, %v675
        %vm733 = vcmp.lt.f32.partialorder %v646, %v680
        %vm734 = vcmp.lt.f32.partialorder %v646, %v685
        %vm735 = vcmp.lt.f32.partialorder %v646, %v690
        %vm736 = vcmp.lt.f32.partialorder %v646, %v695
        %vm737 = vcmp.lt.f32.partialorder %v646, %v700
        %vm738 = vcmp.lt.f32.partialorder %v646, %v705
        %vm739 = vcmp.lt.f32.partialorder %v646, %v710
        %vm740 = vcmp.lt.f32.partialorder %v646, %v715
        %vm741 = vcmp.lt.f32.partialorder %v646, %v720
        %vm742 = vcmp.lt.f32.partialorder %v646, %v725
        %vm743 = vmor %vm627, %vm727
        %vm744 = vmor %vm628, %vm728
        %vm745 = vmor %vm629, %vm729
        %vm746 = vmor %vm630, %vm730
        %vm747 = vmor %vm631, %vm731
        %vm748 = vmor %vm632, %vm732
        %vm749 = vmor %vm633, %vm733
        %vm750 = vmor %vm634, %vm734
        %vm751 = vmor %vm635, %vm735
        %vm752 = vmor %vm636, %vm736
        %vm753 = vmor %vm637, %vm737
        %vm754 = vmor %vm638, %vm738
        %vm755 = vmor %vm639, %vm739
        %vm756 = vmor %vm640, %vm740
        %vm757 = vmor %vm641, %vm741
        %vm758 = vmor %vm642, %vm742
        %v759 = vlaneseq
        %v760 = vshrl.u32 %v759, 7
        %v761 = vsub.s32 1, %v760
        %v762 = vrot.slane %v326, %v761
        %764 = vset.pattern.permute.xlu0 1
        %765 = vperm.xlu0 %764, %v304
        %v766 = vpop.permute.xlu0 %765
        %769 = vset.pattern.permute.xlu0 1
        %770 = vperm.xlu0 %769, %v305
        %v771 = vpop.permute.xlu0 %770
        %774 = vset.pattern.permute.xlu0 1
        %775 = vperm.xlu0 %774, %v306
        %v776 = vpop.permute.xlu0 %775
        %779 = vset.pattern.permute.xlu0 1
        %780 = vperm.xlu0 %779, %v307
        %v781 = vpop.permute.xlu0 %780
        %784 = vset.pattern.permute.xlu0 1
        %785 = vperm.xlu0 %784, %v308
        %v786 = vpop.permute.xlu0 %785
        %789 = vset.pattern.permute.xlu0 1
        %790 = vperm.xlu0 %789, %v309
        %v791 = vpop.permute.xlu0 %790
        %794 = vset.pattern.permute.xlu0 1
        %795 = vperm.xlu0 %794, %v310
        %v796 = vpop.permute.xlu0 %795
        %799 = vset.pattern.permute.xlu0 1
        %800 = vperm.xlu0 %799, %v311
        %v801 = vpop.permute.xlu0 %800
        %804 = vset.pattern.permute.xlu0 1
        %805 = vperm.xlu0 %804, %v312
        %v806 = vpop.permute.xlu0 %805
        %809 = vset.pattern.permute.xlu0 1
        %810 = vperm.xlu0 %809, %v313
        %v811 = vpop.permute.xlu0 %810
        %814 = vset.pattern.permute.xlu0 1
        %815 = vperm.xlu0 %814, %v314
        %v816 = vpop.permute.xlu0 %815
        %819 = vset.pattern.permute.xlu0 1
        %820 = vperm.xlu0 %819, %v315
        %v821 = vpop.permute.xlu0 %820
        %824 = vset.pattern.permute.xlu0 1
        %825 = vperm.xlu0 %824, %v316
        %v826 = vpop.permute.xlu0 %825
        %829 = vset.pattern.permute.xlu0 1
        %830 = vperm.xlu0 %829, %v317
        %v831 = vpop.permute.xlu0 %830
        %834 = vset.pattern.permute.xlu0 1
        %835 = vperm.xlu0 %834, %v318
        %v836 = vpop.permute.xlu0 %835
        %839 = vset.pattern.permute.xlu0 1
        %840 = vperm.xlu0 %839, %v319
        %v841 = vpop.permute.xlu0 %840
        %vm843 = vcmp.lt.f32.partialorder %v762, %v766
        %vm844 = vcmp.lt.f32.partialorder %v762, %v771
        %vm845 = vcmp.lt.f32.partialorder %v762, %v776
        %vm846 = vcmp.lt.f32.partialorder %v762, %v781
        %vm847 = vcmp.lt.f32.partialorder %v762, %v786
        %vm848 = vcmp.lt.f32.partialorder %v762, %v791
        %vm849 = vcmp.lt.f32.partialorder %v762, %v796
        %vm850 = vcmp.lt.f32.partialorder %v762, %v801
        %vm851 = vcmp.lt.f32.partialorder %v762, %v806
        %vm852 = vcmp.lt.f32.partialorder %v762, %v811
        %vm853 = vcmp.lt.f32.partialorder %v762, %v816
        %vm854 = vcmp.lt.f32.partialorder %v762, %v821
        %vm855 = vcmp.lt.f32.partialorder %v762, %v826
        %vm856 = vcmp.lt.f32.partialorder %v762, %v831
        %vm857 = vcmp.lt.f32.partialorder %v762, %v836
        %vm858 = vcmp.lt.f32.partialorder %v762, %v841
        %vm859 = vmor %vm743, %vm843
        %vm860 = vmor %vm744, %vm844
        %vm861 = vmor %vm745, %vm845
        %vm862 = vmor %vm746, %vm846
        %vm863 = vmor %vm747, %vm847
        %vm864 = vmor %vm748, %vm848
        %vm865 = vmor %vm749, %vm849
        %vm866 = vmor %vm750, %vm850
        %vm867 = vmor %vm751, %vm851
        %vm868 = vmor %vm752, %vm852
        %vm869 = vmor %vm753, %vm853
        %vm870 = vmor %vm754, %vm854
        %vm871 = vmor %vm755, %vm855
        %vm872 = vmor %vm756, %vm856
        %vm873 = vmor %vm757, %vm857
        %vm874 = vmor %vm758, %vm858
        %v875 = vsel %vm859, -1.0, %v411
        %v876 = vsel %vm860, -1.0, %v412
        %v877 = vsel %vm861, -1.0, %v413
        %v878 = vsel %vm862, -1.0, %v414
        %v879 = vsel %vm863, -1.0, %v415
        %v880 = vsel %vm864, -1.0, %v416
        %v881 = vsel %vm865, -1.0, %v417
        %v882 = vsel %vm866, -1.0, %v418
        %v883 = vsel %vm867, -1.0, %v419
        %v884 = vsel %vm868, -1.0, %v420
        %v885 = vsel %vm869, -1.0, %v421
        %v886 = vsel %vm870, -1.0, %v422
        %v887 = vsel %vm871, -1.0, %v423
        %v888 = vsel %vm872, -1.0, %v424
        %v889 = vsel %vm873, -1.0, %v425
        %v890 = vsel %vm874, -1.0, %v426
        %v891 = vlaneseq
        %v892 = vshrl.u32 %v891, 7
        %v893 = vadd.s32 %v892, 8
        %v894 = vadd.s32 %v892, 16
        %v895 = vadd.s32 %v892, 24
        %v896 = vadd.s32 %v892, 32
        %v897 = vadd.s32 %v892, 40
        %v898 = vadd.s32 %v892, 48
        %v899 = vadd.s32 %v892, 56
        %v900 = vadd.s32 %v892, 64
        %v901 = vadd.s32 %v892, 72
        %v902 = vadd.s32 %v892, 80
        %v903 = vadd.s32 %v892, 88
        %v904 = vadd.s32 %v892, 96
        %v905 = vadd.s32 %v892, 104
        %v906 = vadd.s32 %v892, 112
        %v907 = vadd.s32 %v892, 120
        %v908 = vlaneseq
        %v909 = vand.u32 %v908, 127
        %vm910 = vcmp.ge.s32.totalorder %v892, 8
        %vm911 = vcmp.ge.s32.totalorder %v893, 8
        %vm912 = vcmp.ge.s32.totalorder %v894, 8
        %vm913 = vcmp.ge.s32.totalorder %v895, 8
        %vm914 = vcmp.ge.s32.totalorder %v896, 8
        %vm915 = vcmp.ge.s32.totalorder %v897, 8
        %vm916 = vcmp.ge.s32.totalorder %v898, 8
        %vm917 = vcmp.ge.s32.totalorder %v899, 8
        %vm918 = vcmp.ge.s32.totalorder %v900, 8
        %vm919 = vcmp.ge.s32.totalorder %v901, 8
        %vm920 = vcmp.ge.s32.totalorder %v902, 8
        %vm921 = vcmp.ge.s32.totalorder %v903, 8
        %vm922 = vcmp.ge.s32.totalorder %v904, 8
        %vm923 = vcmp.ge.s32.totalorder %v905, 8
        %vm924 = vcmp.ge.s32.totalorder %v906, 8
        %vm925 = vcmp.ge.s32.totalorder %v907, 8
        %vm926 = vcmp.ge.s32.totalorder %v909, 8
        %v927 = vsel %vm910, 1, 0
        %v928 = vsel %vm911, 1, 0
        %v929 = vsel %vm912, 1, 0
        %v930 = vsel %vm913, 1, 0
        %v931 = vsel %vm914, 1, 0
        %v932 = vsel %vm915, 1, 0
        %v933 = vsel %vm916, 1, 0
        %v934 = vsel %vm917, 1, 0
        %v935 = vsel %vm918, 1, 0
        %v936 = vsel %vm919, 1, 0
        %v937 = vsel %vm920, 1, 0
        %v938 = vsel %vm921, 1, 0
        %v939 = vsel %vm922, 1, 0
        %v940 = vsel %vm923, 1, 0
        %v941 = vsel %vm924, 1, 0
        %v942 = vsel %vm925, 1, 0
        %vm943 = vcmp.eq.s32.totalorder %v927, 1
        %vm944 = vcmp.eq.s32.totalorder %v928, 1
        %vm945 = vcmp.eq.s32.totalorder %v929, 1
        %vm946 = vcmp.eq.s32.totalorder %v930, 1
        %vm947 = vcmp.eq.s32.totalorder %v931, 1
        %vm948 = vcmp.eq.s32.totalorder %v932, 1
        %vm949 = vcmp.eq.s32.totalorder %v933, 1
        %vm950 = vcmp.eq.s32.totalorder %v934, 1
        %vm951 = vcmp.eq.s32.totalorder %v935, 1
        %vm952 = vcmp.eq.s32.totalorder %v936, 1
        %vm953 = vcmp.eq.s32.totalorder %v937, 1
        %vm954 = vcmp.eq.s32.totalorder %v938, 1
        %vm955 = vcmp.eq.s32.totalorder %v939, 1
        %vm956 = vcmp.eq.s32.totalorder %v940, 1
        %vm957 = vcmp.eq.s32.totalorder %v941, 1
        %vm958 = vcmp.eq.s32.totalorder %v942, 1
        %v959 = vsel %vm926, 1, 0
        %vm960 = vcmp.eq.s32.totalorder %v959, 1
        %vm961 = vmor %vm943, %vm960
        %vm962 = vmor %vm944, %vm960
        %vm963 = vmor %vm945, %vm960
        %vm964 = vmor %vm946, %vm960
        %vm965 = vmor %vm947, %vm960
        %vm966 = vmor %vm948, %vm960
        %vm967 = vmor %vm949, %vm960
        %vm968 = vmor %vm950, %vm960
        %vm969 = vmor %vm951, %vm960
        %vm970 = vmor %vm952, %vm960
        %vm971 = vmor %vm953, %vm960
        %vm972 = vmor %vm954, %vm960
        %vm973 = vmor %vm955, %vm960
        %vm974 = vmor %vm956, %vm960
        %vm975 = vmor %vm957, %vm960
        %vm976 = vmor %vm958, %vm960
        %v977 = vsel %vm961, -1e+30, %v875
        %v978 = vsel %vm962, -1e+30, %v876
        %v979 = vsel %vm963, -1e+30, %v877
        %v980 = vsel %vm964, -1e+30, %v878
        %v981 = vsel %vm965, -1e+30, %v879
        %v982 = vsel %vm966, -1e+30, %v880
        %v983 = vsel %vm967, -1e+30, %v881
        %v984 = vsel %vm968, -1e+30, %v882
        %v985 = vsel %vm969, -1e+30, %v883
        %v986 = vsel %vm970, -1e+30, %v884
        %v987 = vsel %vm971, -1e+30, %v885
        %v988 = vsel %vm972, -1e+30, %v886
        %v989 = vsel %vm973, -1e+30, %v887
        %v990 = vsel %vm974, -1e+30, %v888
        %v991 = vsel %vm975, -1e+30, %v889
        %v992 = vsel %vm976, -1e+30, %v890
        %993 = vst [vmem:[%s149] sm:$0xff] %v977
        %994 = vst [vmem:[%s149 + $0x8] sm:$0xff] %v978
        %995 = vst [vmem:[%s149 + $0x10] sm:$0xff] %v979
        %996 = vst [vmem:[%s149 + $0x18] sm:$0xff] %v980
        %997 = vst [vmem:[%s149 + $0x20] sm:$0xff] %v981
        %998 = vst [vmem:[%s149 + $0x28] sm:$0xff] %v982
        %999 = vst [vmem:[%s149 + $0x30] sm:$0xff] %v983
        %1000 = vst [vmem:[%s149 + $0x38] sm:$0xff] %v984
        %1001 = vst [vmem:[%s149 + $0x40] sm:$0xff] %v985
        %1002 = vst [vmem:[%s149 + $0x48] sm:$0xff] %v986
        %1003 = vst [vmem:[%s149 + $0x50] sm:$0xff] %v987
        %1004 = vst [vmem:[%s149 + $0x58] sm:$0xff] %v988
        %1005 = vst [vmem:[%s149 + $0x60] sm:$0xff] %v989
        %1006 = vst [vmem:[%s149 + $0x68] sm:$0xff] %v990
        %1007 = vst [vmem:[%s149 + $0x70] sm:$0xff] %v991
        %1008 = vst [vmem:[%s149 + $0x78] sm:$0xff] %v992
        %s1009 = sand.u32 %s76, 1
        %s1010 = scalar_lea.sflag [#allocation3], %s1009
        %s1011 = sand.u32 %s76, 1
        %s1012 = smul.addr %s1011, 128
        %s1013 = scalar_lea.vmem [#allocation2], %s1012
        // Predicated region
        $region29: #{tpu_custom_call.1} parent=27 // pred_check
          %p1014 = pneg %p86
        $region30: #{tpu_custom_call.1} parent=27 // pred_check_branch
          %1016 = sbr.rel (%p1014) target = $region32
        $region31: #{tpu_custom_call.1} parent=27 // pred_region
          %s1018 = ssub.s32 2048, 2048
          %1019 = vsyncadd %s1010, %s1018
          %s1020 = smul.addr %s16, 16
          %s1021 = smul.addr %s1020, 128
          %s1022 = scalar_lea.hbm %s2, %s1021
          %s1023 = sshll.u32 %s1013, 4
          %s1024 = int_to_ptr.vmem [resolvable:$true] %s1023
          %1029 = dma.vmem_to_hbm [thread:$0]  %s1024, 2048, %s1022, %s1010, 128, 128, 8
        $region32: #{tpu_custom_call.1} parent=27 // pred_fallthru
          _
      $region28: #{tpu_custom_call.1} parent=5 // pred_fallthru
        _
      %p1030 = scmp.le.s32.totalorder 2, %s11
      // Predicated region
      $region33: #{tpu_custom_call.1} parent=5 // pred_check
        %p1031 = pneg %p1030
      $region34: #{tpu_custom_call.1} parent=5 // pred_check_branch
        %1033 = sbr.rel (%p1031) target = $region36
      $region35: #{tpu_custom_call.1} parent=5 // pred_region
        %s1034 = ssub.s32 %s11, 2
        // Predicated region
        $region37: #{tpu_custom_call.1} parent=35 // pred_check
          %p1035 = pneg %p92
        $region38: #{tpu_custom_call.1} parent=35 // pred_check_branch
          %1037 = sbr.rel (%p1035) target = $region40
        $region39: #{tpu_custom_call.1} parent=35 // pred_region
          %s1038 = sand.u32 %s77, 1
          %s1039 = scalar_lea.sflag [#allocation3], %s1038
          %s1040 = sand.u32 %s77, 1
          %s1041 = smul.addr %s1040, 128
          %s1042 = scalar_lea.vmem [#allocation2], %s1041
          %1043 = dma.done %s1039, 2048
        $region40: #{tpu_custom_call.1} parent=35 // pred_fallthru
          _
      $region36: #{tpu_custom_call.1} parent=5 // pred_fallthru
        _
    $region6: #{tpu_custom_call.1} parent=1 // loop_footer
      %s15 = sadd.s32 1, %s11
    $region7: #{tpu_custom_call.1} parent=1 // loop_footer_branch
      %10 = sbr.rel target = $region3
    $region8: #{tpu_custom_call.1} parent=1 // loop_exit
      _
    %1044 = vsyncpa [#allocation3], 1
    %s1045 = scalar_lea.sflag [#allocation3], 1
    %1046 = vsyncpa %s1045, 1

</llo_original>
